<compile_context>
chip_gen: v7x
topology: tpu7x:2x2x1
jax: 0.10.0
libtpu: 0.0.40
codegen_flags: <defaults>
</compile_context>

<pallas_src>
import functools
import random

import jax
import jax.numpy as jnp
import numpy as np
from jax.experimental import pallas as pl
from jax.experimental.pallas import tpu as pltpu


# ----------------------- module-level helpers (mirror the PyTorch code) --------------
def gen_idx(num_branch):
    idx = []
    for i in range(num_branch - 1):
        for j in range(i + 1, num_branch):
            idx.append((i, j))
    return idx


def random_slice(nums, seed=0):
    # deterministic version of the reference random_slice (seeded shuffle)
    dim = sum(nums)
    index_ = list(range(dim))
    rng = random.Random(seed)
    rng.shuffle(index_)
    index_list = [index_[nums[i]:nums[i] + nums[i + 1]] for i in range(len(nums) - 1)]
    return index_list


# ----------------------------------- Pallas kernel -----------------------------------
def jsdiv_kernel(x_ref, out_ref, *, beta, num_branch, feat):
    # x_ref: (n, num_branch*feat) f32 in VMEM ; out_ref: (1, 1) f32 in SMEM
    n = x_ref.shape[0]

    lsm = []   # per-branch log-softmax rows, computed once (each branch is in 3 pairs)
    sm = []    # per-branch softmax rows
    for b in range(num_branch):                        # static unroll (4 branches)
        x = x_ref[:, b * feat:(b + 1) * feat]          # lane-aligned static slice
        # row L2-normalize via a single EUP rsqrt (no sqrt + divide on the VPU)
        xn = x * jax.lax.rsqrt(jnp.sum(x * x, axis=1, keepdims=True))
        # gram = xn @ xn.T on the MXU (contract feature dim, no explicit transpose)
        gram = jax.lax.dot_general(
            xn, xn, (((1,), (1,)), ((), ())),
            preferred_element_type=jnp.float32)        # (n, n)
        # rows are unit-norm => ||xi||^2 + ||xj||^2 == 2, so drop the sq / sq_row
        # computation (and the pathological (n,1)@(1,n) K=1 matmul) entirely.
        d2 = 2.0 - 2.0 * gram
        dist = jnp.sqrt(jnp.maximum(d2, 1e-12))
        z = -beta * dist
        # log-softmax without the row-max subtraction: z <= 0 and every row has a
        # ~0 diagonal entry, so sum(exp(z)) >= ~1 and the lse is already stable.
        lse = jnp.log(jnp.sum(jnp.exp(z), axis=1, keepdims=True))
        lz = z - lse
        lsm.append(lz)
        sm.append(jnp.exp(lz))

    pairs = gen_idx(num_branch)
    acc = jnp.float32(0.0)
    for (i, j) in pairs:                               # static unroll (6 pairs)
        m = 0.5 * (sm[i] + sm[j])
        # fused KLDiv pair: kl_a + kl_b = sum(m * (2*log(m) - lsm_a - lsm_b))
        acc = acc + jnp.sum(m * (2.0 * jnp.log(m) - lsm[i] - lsm[j]))

    # fold the per-pair 0.5/n factor and the mean over pairs into one scalar multiply
    out_ref[0, 0] = acc * jnp.float32(0.5 / (n * len(pairs)))


# --------------------------------- JAX-side wrapper -----------------------------------
class JSDivLoss:
    def __init__(self, alpha=40, beta=40, k=100, nums=(0, 128, 128, 128, 128)):
        self.nums = list(nums)
        self.alpha = float(alpha)
        self.beta = float(beta)
        self.K = k
        self.index_list = random_slice(self.nums, seed=0)
        self.num_branch = len(self.index_list)
        self.feat = self.nums[1]
        # one static column permutation covering all branches -> single XLA gather
        self.perm = jnp.asarray(
            np.concatenate([np.asarray(ix, dtype=np.int32) for ix in self.index_list]),
            dtype=jnp.int32)

    def __call__(self, inputs, targets=None):
        # targets is unused in the reference forward pass
        x = jnp.take(inputs.astype(jnp.float32), self.perm, axis=1)  # (n, B*feat)
        n = x.shape[0]
        npairs = self.num_branch * (self.num_branch - 1) // 2
        kern = functools.partial(jsdiv_kernel, beta=self.beta,
                                 num_branch=self.num_branch, feat=self.feat)
        ce = pl.CostEstimate(
            flops=int(self.num_branch * (2 * n * n * self.feat + 3 * n * self.feat
                                          + 6 * n * n) + npairs * 6 * n * n),
            transcendentals=int(self.num_branch * 3 * n * n + npairs * n * n),
            bytes_accessed=int(x.size * 4 + 4))
        # TODO(synk): for large n, add a row-block grid (dimension_semantics="parallel")
        # and tile the per-branch (n,n) strips so VMEM stays bounded and both v7x TCs
        # are used; at n=8 the gridless single-block form is optimal (overhead-bound).
        out = pl.pallas_call(
            kern,
            out_shape=jax.ShapeDtypeStruct((1, 1), jnp.float32),
            in_specs=[pl.BlockSpec(memory_space=pltpu.MemorySpace.VMEM)],
            out_specs=pl.BlockSpec(memory_space=pltpu.MemorySpace.SMEM),
            cost_estimate=ce,
        )(x)
        return out[0, 0]


# --------------------------------- plain-JAX reference --------------------------------
def _ref_jsdiv(inputs, index_list, beta):
    dists = []
    for idx in index_list:
        x = inputs[:, np.asarray(idx)]
        xn = x / jnp.linalg.norm(x, axis=1, keepdims=True)
        sq = jnp.sum(xn * xn, axis=1, keepdims=True)
        gram = jnp.matmul(xn, xn.T, precision=jax.lax.Precision.HIGHEST)
        d2 = sq + sq.T - 2.0 * gram
        dists.append(jnp.sqrt(jnp.clip(d2, 1e-12)))
    n = inputs.shape[0]
    vals = []
    for (i, j) in gen_idx(len(dists)):
        a = -beta * dists[i]
        b = -beta * dists[j]
        lsa = jax.nn.log_softmax(a, axis=1)
        lsb = jax.nn.log_softmax(b, axis=1)
        m = 0.5 * (jnp.exp(lsa) + jnp.exp(lsb))
        kl_a = jnp.sum(m * (jnp.log(m) - lsa))
        kl_b = jnp.sum(m * (jnp.log(m) - lsb))
        vals.append(0.5 / n * (kl_a + kl_b))
    return jnp.mean(jnp.stack(vals))


if __name__ == "__main__":
    key = jax.random.PRNGKey(0)
    n, D = 8, 512                       # batch of 8 feature vectors, 4 branches x 128 dims
    inputs = jax.random.normal(key, (n, D), dtype=jnp.float32)
    targets = jnp.arange(n, dtype=jnp.int32)   # unused by the forward pass

    loss_mod = JSDivLoss()              # alpha=40, beta=40, nums=[0,128,128,128,128]
    out = loss_mod(inputs, targets)
    out = jax.block_until_ready(out)

    ref = _ref_jsdiv(inputs, loss_mod.index_list, loss_mod.beta)
    assert np.isfinite(float(out))
    assert np.allclose(float(out), float(ref), rtol=1e-3, atol=1e-6), (float(out), float(ref))
    print("KERNEL_OK")
</pallas_src>

<mosaic_0001>
module attributes {stable_mosaic.version = 11 : i64} {
  func.func @jsdiv_kernel(%arg0: memref<8x512xf32, #tpu.memory_space<vmem>>, %arg1: memref<1x1xf32, #tpu.memory_space<smem>>) attributes {dimension_semantics = [], scalar_prefetch = 0 : i64, scratch_operands = 0 : i64, tpu.core_type = #tpu.core_type<tc>} {
    %c0 = arith.constant 0 : index
    %c0_0 = arith.constant 0 : index
    %0 = vector.load %arg0[%c0, %c0_0] : memref<8x512xf32, #tpu.memory_space<vmem>>, vector<8x128xf32>
    %1 = arith.mulf %0, %0 : vector<8x128xf32>
    %cst = arith.constant dense<0.000000e+00> : vector<8xf32>
    %2 = vector.multi_reduction <add>, %1, %cst [1] : vector<8x128xf32> to vector<8xf32>
    %3 = vector.shape_cast %2 : vector<8xf32> to vector<8x1xf32>
    %4 = math.rsqrt %3 : vector<8x1xf32>
    %5 = vector.broadcast %4 : vector<8x1xf32> to vector<8x128xf32>
    %6 = arith.mulf %0, %5 : vector<8x128xf32>
    %cst_1 = arith.constant dense<0.000000e+00> : vector<8x8xf32>
    %7 = tpu.matmul %6, %6, %cst_1 {dimension_numbers = #tpu.dot_dimension_numbers<[1], [1], [0], [0], [0, 0, 1, 0], [], []>} : vector<8x128xf32>, vector<8x128xf32>, vector<8x8xf32> -> vector<8x8xf32>
    %cst_2 = arith.constant 2.000000e+00 : f32
    %8 = vector.broadcast %cst_2 : f32 to vector<8x8xf32>
    %9 = arith.mulf %8, %7 : vector<8x8xf32>
    %cst_3 = arith.constant 2.000000e+00 : f32
    %10 = vector.broadcast %cst_3 : f32 to vector<8x8xf32>
    %11 = arith.subf %10, %9 : vector<8x8xf32>
    %cst_4 = arith.constant 9.99999996E-13 : f32
    %12 = vector.broadcast %cst_4 : f32 to vector<8x8xf32>
    %13 = arith.maximumf %11, %12 : vector<8x8xf32>
    %14 = math.sqrt %13 : vector<8x8xf32>
    %cst_5 = arith.constant -4.000000e+01 : f32
    %15 = vector.broadcast %cst_5 : f32 to vector<8x8xf32>
    %16 = arith.mulf %15, %14 : vector<8x8xf32>
    %17 = math.exp %16 : vector<8x8xf32>
    %cst_6 = arith.constant dense<0.000000e+00> : vector<8xf32>
    %18 = vector.multi_reduction <add>, %17, %cst_6 [1] : vector<8x8xf32> to vector<8xf32>
    %19 = vector.shape_cast %18 : vector<8xf32> to vector<8x1xf32>
    %20 = math.log %19 : vector<8x1xf32>
    %21 = vector.broadcast %20 : vector<8x1xf32> to vector<8x8xf32>
    %22 = arith.subf %16, %21 : vector<8x8xf32>
    %23 = math.exp %22 : vector<8x8xf32>
    %c0_7 = arith.constant 0 : index
    %c128 = arith.constant 128 : index
    %24 = vector.load %arg0[%c0_7, %c128] : memref<8x512xf32, #tpu.memory_space<vmem>>, vector<8x128xf32>
    %25 = arith.mulf %24, %24 : vector<8x128xf32>
    %cst_8 = arith.constant dense<0.000000e+00> : vector<8xf32>
    %26 = vector.multi_reduction <add>, %25, %cst_8 [1] : vector<8x128xf32> to vector<8xf32>
    %27 = vector.shape_cast %26 : vector<8xf32> to vector<8x1xf32>
    %28 = math.rsqrt %27 : vector<8x1xf32>
    %29 = vector.broadcast %28 : vector<8x1xf32> to vector<8x128xf32>
    %30 = arith.mulf %24, %29 : vector<8x128xf32>
    %cst_9 = arith.constant dense<0.000000e+00> : vector<8x8xf32>
    %31 = tpu.matmul %30, %30, %cst_9 {dimension_numbers = #tpu.dot_dimension_numbers<[1], [1], [0], [0], [0, 0, 1, 0], [], []>} : vector<8x128xf32>, vector<8x128xf32>, vector<8x8xf32> -> vector<8x8xf32>
    %cst_10 = arith.constant 2.000000e+00 : f32
    %32 = vector.broadcast %cst_10 : f32 to vector<8x8xf32>
    %33 = arith.mulf %32, %31 : vector<8x8xf32>
    %cst_11 = arith.constant 2.000000e+00 : f32
    %34 = vector.broadcast %cst_11 : f32 to vector<8x8xf32>
    %35 = arith.subf %34, %33 : vector<8x8xf32>
    %cst_12 = arith.constant 9.99999996E-13 : f32
    %36 = vector.broadcast %cst_12 : f32 to vector<8x8xf32>
    %37 = arith.maximumf %35, %36 : vector<8x8xf32>
    %38 = math.sqrt %37 : vector<8x8xf32>
    %cst_13 = arith.constant -4.000000e+01 : f32
    %39 = vector.broadcast %cst_13 : f32 to vector<8x8xf32>
    %40 = arith.mulf %39, %38 : vector<8x8xf32>
    %41 = math.exp %40 : vector<8x8xf32>
    %cst_14 = arith.constant dense<0.000000e+00> : vector<8xf32>
    %42 = vector.multi_reduction <add>, %41, %cst_14 [1] : vector<8x8xf32> to vector<8xf32>
    %43 = vector.shape_cast %42 : vector<8xf32> to vector<8x1xf32>
    %44 = math.log %43 : vector<8x1xf32>
    %45 = vector.broadcast %44 : vector<8x1xf32> to vector<8x8xf32>
    %46 = arith.subf %40, %45 : vector<8x8xf32>
    %47 = math.exp %46 : vector<8x8xf32>
    %c0_15 = arith.constant 0 : index
    %c256 = arith.constant 256 : index
    %48 = vector.load %arg0[%c0_15, %c256] : memref<8x512xf32, #tpu.memory_space<vmem>>, vector<8x128xf32>
    %49 = arith.mulf %48, %48 : vector<8x128xf32>
    %cst_16 = arith.constant dense<0.000000e+00> : vector<8xf32>
    %50 = vector.multi_reduction <add>, %49, %cst_16 [1] : vector<8x128xf32> to vector<8xf32>
    %51 = vector.shape_cast %50 : vector<8xf32> to vector<8x1xf32>
    %52 = math.rsqrt %51 : vector<8x1xf32>
    %53 = vector.broadcast %52 : vector<8x1xf32> to vector<8x128xf32>
    %54 = arith.mulf %48, %53 : vector<8x128xf32>
    %cst_17 = arith.constant dense<0.000000e+00> : vector<8x8xf32>
    %55 = tpu.matmul %54, %54, %cst_17 {dimension_numbers = #tpu.dot_dimension_numbers<[1], [1], [0], [0], [0, 0, 1, 0], [], []>} : vector<8x128xf32>, vector<8x128xf32>, vector<8x8xf32> -> vector<8x8xf32>
    %cst_18 = arith.constant 2.000000e+00 : f32
    %56 = vector.broadcast %cst_18 : f32 to vector<8x8xf32>
    %57 = arith.mulf %56, %55 : vector<8x8xf32>
    %cst_19 = arith.constant 2.000000e+00 : f32
    %58 = vector.broadcast %cst_19 : f32 to vector<8x8xf32>
    %59 = arith.subf %58, %57 : vector<8x8xf32>
    %cst_20 = arith.constant 9.99999996E-13 : f32
    %60 = vector.broadcast %cst_20 : f32 to vector<8x8xf32>
    %61 = arith.maximumf %59, %60 : vector<8x8xf32>
    %62 = math.sqrt %61 : vector<8x8xf32>
    %cst_21 = arith.constant -4.000000e+01 : f32
    %63 = vector.broadcast %cst_21 : f32 to vector<8x8xf32>
    %64 = arith.mulf %63, %62 : vector<8x8xf32>
    %65 = math.exp %64 : vector<8x8xf32>
    %cst_22 = arith.constant dense<0.000000e+00> : vector<8xf32>
    %66 = vector.multi_reduction <add>, %65, %cst_22 [1] : vector<8x8xf32> to vector<8xf32>
    %67 = vector.shape_cast %66 : vector<8xf32> to vector<8x1xf32>
    %68 = math.log %67 : vector<8x1xf32>
    %69 = vector.broadcast %68 : vector<8x1xf32> to vector<8x8xf32>
    %70 = arith.subf %64, %69 : vector<8x8xf32>
    %71 = math.exp %70 : vector<8x8xf32>
    %c0_23 = arith.constant 0 : index
    %c384 = arith.constant 384 : index
    %72 = vector.load %arg0[%c0_23, %c384] : memref<8x512xf32, #tpu.memory_space<vmem>>, vector<8x128xf32>
    %73 = arith.mulf %72, %72 : vector<8x128xf32>
    %cst_24 = arith.constant dense<0.000000e+00> : vector<8xf32>
    %74 = vector.multi_reduction <add>, %73, %cst_24 [1] : vector<8x128xf32> to vector<8xf32>
    %75 = vector.shape_cast %74 : vector<8xf32> to vector<8x1xf32>
    %76 = math.rsqrt %75 : vector<8x1xf32>
    %77 = vector.broadcast %76 : vector<8x1xf32> to vector<8x128xf32>
    %78 = arith.mulf %72, %77 : vector<8x128xf32>
    %cst_25 = arith.constant dense<0.000000e+00> : vector<8x8xf32>
    %79 = tpu.matmul %78, %78, %cst_25 {dimension_numbers = #tpu.dot_dimension_numbers<[1], [1], [0], [0], [0, 0, 1, 0], [], []>} : vector<8x128xf32>, vector<8x128xf32>, vector<8x8xf32> -> vector<8x8xf32>
    %cst_26 = arith.constant 2.000000e+00 : f32
    %80 = vector.broadcast %cst_26 : f32 to vector<8x8xf32>
    %81 = arith.mulf %80, %79 : vector<8x8xf32>
    %cst_27 = arith.constant 2.000000e+00 : f32
    %82 = vector.broadcast %cst_27 : f32 to vector<8x8xf32>
    %83 = arith.subf %82, %81 : vector<8x8xf32>
    %cst_28 = arith.constant 9.99999996E-13 : f32
    %84 = vector.broadcast %cst_28 : f32 to vector<8x8xf32>
    %85 = arith.maximumf %83, %84 : vector<8x8xf32>
    %86 = math.sqrt %85 : vector<8x8xf32>
    %cst_29 = arith.constant -4.000000e+01 : f32
    %87 = vector.broadcast %cst_29 : f32 to vector<8x8xf32>
    %88 = arith.mulf %87, %86 : vector<8x8xf32>
    %89 = math.exp %88 : vector<8x8xf32>
    %cst_30 = arith.constant dense<0.000000e+00> : vector<8xf32>
    %90 = vector.multi_reduction <add>, %89, %cst_30 [1] : vector<8x8xf32> to vector<8xf32>
    %91 = vector.shape_cast %90 : vector<8xf32> to vector<8x1xf32>
    %92 = math.log %91 : vector<8x1xf32>
    %93 = vector.broadcast %92 : vector<8x1xf32> to vector<8x8xf32>
    %94 = arith.subf %88, %93 : vector<8x8xf32>
    %95 = math.exp %94 : vector<8x8xf32>
    %96 = arith.addf %23, %47 : vector<8x8xf32>
    %cst_31 = arith.constant 5.000000e-01 : f32
    %97 = vector.broadcast %cst_31 : f32 to vector<8x8xf32>
    %98 = arith.mulf %97, %96 : vector<8x8xf32>
    %99 = math.log %98 : vector<8x8xf32>
    %cst_32 = arith.constant 2.000000e+00 : f32
    %100 = vector.broadcast %cst_32 : f32 to vector<8x8xf32>
    %101 = arith.mulf %100, %99 : vector<8x8xf32>
    %102 = arith.subf %101, %22 : vector<8x8xf32>
    %103 = arith.subf %102, %46 : vector<8x8xf32>
    %104 = arith.mulf %98, %103 : vector<8x8xf32>
    %105 = vector.shape_cast %104 : vector<8x8xf32> to vector<1x8x8xf32>
    %cst_33 = arith.constant dense<0.000000e+00> : vector<1xf32>
    %106 = vector.multi_reduction <add>, %105, %cst_33 [1, 2] : vector<1x8x8xf32> to vector<1xf32>
    %107 = vector.shape_cast %106 : vector<1xf32> to vector<1x1x1xf32>
    %108 = vector.extract %107[0, 0, 0] : f32 from vector<1x1x1xf32>
    %cst_34 = arith.constant 0.000000e+00 : f32
    %109 = arith.addf %cst_34, %108 : f32
    %110 = arith.addf %23, %71 : vector<8x8xf32>
    %cst_35 = arith.constant 5.000000e-01 : f32
    %111 = vector.broadcast %cst_35 : f32 to vector<8x8xf32>
    %112 = arith.mulf %111, %110 : vector<8x8xf32>
    %113 = math.log %112 : vector<8x8xf32>
    %cst_36 = arith.constant 2.000000e+00 : f32
    %114 = vector.broadcast %cst_36 : f32 to vector<8x8xf32>
    %115 = arith.mulf %114, %113 : vector<8x8xf32>
    %116 = arith.subf %115, %22 : vector<8x8xf32>
    %117 = arith.subf %116, %70 : vector<8x8xf32>
    %118 = arith.mulf %112, %117 : vector<8x8xf32>
    %119 = vector.shape_cast %118 : vector<8x8xf32> to vector<1x8x8xf32>
    %cst_37 = arith.constant dense<0.000000e+00> : vector<1xf32>
    %120 = vector.multi_reduction <add>, %119, %cst_37 [1, 2] : vector<1x8x8xf32> to vector<1xf32>
    %121 = vector.shape_cast %120 : vector<1xf32> to vector<1x1x1xf32>
    %122 = vector.extract %121[0, 0, 0] : f32 from vector<1x1x1xf32>
    %123 = arith.addf %109, %122 : f32
    %124 = arith.addf %23, %95 : vector<8x8xf32>
    %cst_38 = arith.constant 5.000000e-01 : f32
    %125 = vector.broadcast %cst_38 : f32 to vector<8x8xf32>
    %126 = arith.mulf %125, %124 : vector<8x8xf32>
    %127 = math.log %126 : vector<8x8xf32>
    %cst_39 = arith.constant 2.000000e+00 : f32
    %128 = vector.broadcast %cst_39 : f32 to vector<8x8xf32>
    %129 = arith.mulf %128, %127 : vector<8x8xf32>
    %130 = arith.subf %129, %22 : vector<8x8xf32>
    %131 = arith.subf %130, %94 : vector<8x8xf32>
    %132 = arith.mulf %126, %131 : vector<8x8xf32>
    %133 = vector.shape_cast %132 : vector<8x8xf32> to vector<1x8x8xf32>
    %cst_40 = arith.constant dense<0.000000e+00> : vector<1xf32>
    %134 = vector.multi_reduction <add>, %133, %cst_40 [1, 2] : vector<1x8x8xf32> to vector<1xf32>
    %135 = vector.shape_cast %134 : vector<1xf32> to vector<1x1x1xf32>
    %136 = vector.extract %135[0, 0, 0] : f32 from vector<1x1x1xf32>
    %137 = arith.addf %123, %136 : f32
    %138 = arith.addf %47, %71 : vector<8x8xf32>
    %cst_41 = arith.constant 5.000000e-01 : f32
    %139 = vector.broadcast %cst_41 : f32 to vector<8x8xf32>
    %140 = arith.mulf %139, %138 : vector<8x8xf32>
    %141 = math.log %140 : vector<8x8xf32>
    %cst_42 = arith.constant 2.000000e+00 : f32
    %142 = vector.broadcast %cst_42 : f32 to vector<8x8xf32>
    %143 = arith.mulf %142, %141 : vector<8x8xf32>
    %144 = arith.subf %143, %46 : vector<8x8xf32>
    %145 = arith.subf %144, %70 : vector<8x8xf32>
    %146 = arith.mulf %140, %145 : vector<8x8xf32>
    %147 = vector.shape_cast %146 : vector<8x8xf32> to vector<1x8x8xf32>
    %cst_43 = arith.constant dense<0.000000e+00> : vector<1xf32>
    %148 = vector.multi_reduction <add>, %147, %cst_43 [1, 2] : vector<1x8x8xf32> to vector<1xf32>
    %149 = vector.shape_cast %148 : vector<1xf32> to vector<1x1x1xf32>
    %150 = vector.extract %149[0, 0, 0] : f32 from vector<1x1x1xf32>
    %151 = arith.addf %137, %150 : f32
    %152 = arith.addf %47, %95 : vector<8x8xf32>
    %cst_44 = arith.constant 5.000000e-01 : f32
    %153 = vector.broadcast %cst_44 : f32 to vector<8x8xf32>
    %154 = arith.mulf %153, %152 : vector<8x8xf32>
    %155 = math.log %154 : vector<8x8xf32>
    %cst_45 = arith.constant 2.000000e+00 : f32
    %156 = vector.broadcast %cst_45 : f32 to vector<8x8xf32>
    %157 = arith.mulf %156, %155 : vector<8x8xf32>
    %158 = arith.subf %157, %46 : vector<8x8xf32>
    %159 = arith.subf %158, %94 : vector<8x8xf32>
    %160 = arith.mulf %154, %159 : vector<8x8xf32>
    %161 = vector.shape_cast %160 : vector<8x8xf32> to vector<1x8x8xf32>
    %cst_46 = arith.constant dense<0.000000e+00> : vector<1xf32>
    %162 = vector.multi_reduction <add>, %161, %cst_46 [1, 2] : vector<1x8x8xf32> to vector<1xf32>
    %163 = vector.shape_cast %162 : vector<1xf32> to vector<1x1x1xf32>
    %164 = vector.extract %163[0, 0, 0] : f32 from vector<1x1x1xf32>
    %165 = arith.addf %151, %164 : f32
    %166 = arith.addf %71, %95 : vector<8x8xf32>
    %cst_47 = arith.constant 5.000000e-01 : f32
    %167 = vector.broadcast %cst_47 : f32 to vector<8x8xf32>
    %168 = arith.mulf %167, %166 : vector<8x8xf32>
    %169 = math.log %168 : vector<8x8xf32>
    %cst_48 = arith.constant 2.000000e+00 : f32
    %170 = vector.broadcast %cst_48 : f32 to vector<8x8xf32>
    %171 = arith.mulf %170, %169 : vector<8x8xf32>
    %172 = arith.subf %171, %70 : vector<8x8xf32>
    %173 = arith.subf %172, %94 : vector<8x8xf32>
    %174 = arith.mulf %168, %173 : vector<8x8xf32>
    %175 = vector.shape_cast %174 : vector<8x8xf32> to vector<1x8x8xf32>
    %cst_49 = arith.constant dense<0.000000e+00> : vector<1xf32>
    %176 = vector.multi_reduction <add>, %175, %cst_49 [1, 2] : vector<1x8x8xf32> to vector<1xf32>
    %177 = vector.shape_cast %176 : vector<1xf32> to vector<1x1x1xf32>
    %178 = vector.extract %177[0, 0, 0] : f32 from vector<1x1x1xf32>
    %179 = arith.addf %165, %178 : f32
    %cst_50 = arith.constant 0.010416667 : f32
    %180 = arith.mulf %179, %cst_50 : f32
    %c0_51 = arith.constant 0 : index
    %c0_52 = arith.constant 0 : index
    %181 = memref.load %arg1[%c0_51, %c0_52] : memref<1x1xf32, #tpu.memory_space<smem>>
    memref.store %180, %arg1[%c0_51, %c0_52] : memref<1x1xf32, #tpu.memory_space<smem>>
    return
  }
}

</mosaic_0001>

<llo_original>
// kernel: tpu_custom_call.1
$region0: #{tpu_custom_call.1}
  #allocation0 [shape = 'u32[]', space=smem, size = 0x4, offset = 0x4, fixed_abs, tag = 'smem constant byte address 0x4 - core index']
  #allocation1 [shape = 'u32[144,128]{1,0:T(1,128)}', space=vmem, size = 0x12000, scoped, tag = 'internal scratch']
  %s0 = inlined_call_operand.hbm [shape: f32[8,512], index: 0, kind: input, shape index: {}]
  %s1 = inlined_call_operand.hbm [shape: f32[1,1], index: 1, kind: output, shape index: {}]
  %s2 = sld [smem:[#allocation0]]
  $region18: #{tpu_custom_call.1} parent=0
    _
  %s4 = ssub.s32 1, %s2
  %s5 = scalar_select 0, %s4, %s2
  $region1: #{tpu_custom_call.1} parent=0
    #allocation2 [shape = 'u8[16384]{0}', space=vmem, size = 0x4000, scoped, tag = 'input window, operand 0, single buffered']
    #allocation3 [shape = 's32[1]{0}', space=sflag, size = 0x4, scoped, tag = 'scoped memory for tpu_custom_call.1']
    #allocation4 [shape = 's32[1]{0}', space=sflag, size = 0x4, scoped, tag = 'scoped memory for tpu_custom_call.1']
    #allocation5 [shape = 'u8[512]{0}', space=smem, size = 0x200, scoped, tag = 'output window, operand 0, single buffered']
    %6 = vsyncpa [#allocation3], 0
    %7 = vsyncpa [#allocation4], 0
    // Predicated region
    $region2: #{tpu_custom_call.1} parent=1 // pred_check
      _
    $region3: #{tpu_custom_call.1} parent=1 // pred_check_branch
      %9 = sbr.rel (0) target = $region5
    $region4: #{tpu_custom_call.1} parent=1 // pred_region
      %s11 = ssub.s32 512, 512
      %12 = vsyncadd [#allocation3], %s11
      %s14 = sshll.u32 [#allocation2], 4
      %s15 = int_to_ptr.vmem [resolvable:$true] %s14
      %17 = dma.hbm_to_vmem [thread:$0]  %s0, 512, %s15, [#allocation3]
    $region5: #{tpu_custom_call.1} parent=1 // pred_fallthru
      _
    // Predicated region
    $region6: #{tpu_custom_call.1} parent=1 // pred_check
      _
    $region7: #{tpu_custom_call.1} parent=1 // pred_check_branch
      %19 = sbr.rel (0) target = $region9
    $region8: #{tpu_custom_call.1} parent=1 // pred_region
      %20 = dma.done [#allocation3], 512
    $region9: #{tpu_custom_call.1} parent=1 // pred_fallthru
      _
    %v21 = vld [vmem:[#allocation2] sm:$0xff]
    %v22 = vmul.f32 %v21, %v21
    %23 = vadd.xlane.f32.xlu0 %v22
    %v24 = vpop.xlane.xlu0 %23
    %v25 = vrsqrt.pop %v24
    %v26 = vmul.f32 %v21, %v25
    %27 = vmatprep.subr.mxu0 0.0
    %28 = vmatpush1.xpose.msra.mxu0 %v26
    %29 = vmatprep.subr.mxu0 0.0
    %30 = vmatpush1.xpose.msra.mxu0 0.0
    %31 = vmatprep.subr.mxu0 0.0
    %32 = vmatpush1.xpose.msra.mxu0 0.0
    %33 = vmatprep.subr.mxu0 0.0
    %34 = vmatpush1.xpose.msra.mxu0 0.0
    %35 = vmatprep.subr.mxu0 0.0
    %36 = vmatpush1.xpose.msra.mxu0 0.0
    %37 = vmatprep.subr.mxu0 0.0
    %38 = vmatpush1.xpose.msra.mxu0 0.0
    %39 = vmatprep.subr.mxu0 0.0
    %40 = vmatpush1.xpose.msra.mxu0 0.0
    %41 = vmatprep.subr.mxu0 0.0
    %42 = vmatpush1.xpose.msra.mxu0 0.0
    %43 = vmatprep.subr.mxu0 0.0
    %44 = vmatpush1.xpose.msra.mxu0 0.0
    %45 = vmatprep.subr.mxu0 0.0
    %46 = vmatpush1.xpose.msra.mxu0 0.0
    %47 = vmatprep.subr.mxu0 0.0
    %48 = vmatpush1.xpose.msra.mxu0 0.0
    %49 = vmatprep.subr.mxu0 0.0
    %50 = vmatpush1.xpose.msra.mxu0 0.0
    %51 = vmatprep.subr.mxu0 0.0
    %52 = vmatpush1.xpose.msra.mxu0 0.0
    %53 = vmatprep.subr.mxu0 0.0
    %54 = vmatpush1.xpose.msra.mxu0 0.0
    %55 = vmatprep.subr.mxu0 0.0
    %56 = vmatpush1.xpose.msra.mxu0 0.0
    %57 = vmatprep.subr.mxu0 0.0
    %58 = vmatpush1.xpose.msra.mxu0 0.0
    %59 = vmatprep.subr.mxu0 0.0
    %60 = vmatpush1.xpose.msra.mxu0 0.0
    %61 = vmatprep.subr.mxu0 0.0
    %62 = vmatpush1.xpose.msra.mxu0 0.0
    %63 = vmatprep.subr.mxu0 0.0
    %64 = vmatpush1.xpose.msra.mxu0 0.0
    %65 = vmatprep.subr.mxu0 0.0
    %66 = vmatpush1.xpose.msra.mxu0 0.0
    %67 = vmatprep.subr.mxu0 0.0
    %68 = vmatpush1.xpose.msra.mxu0 0.0
    %69 = vmatprep.subr.mxu0 0.0
    %70 = vmatpush1.xpose.msra.mxu0 0.0
    %71 = vmatprep.subr.mxu0 0.0
    %72 = vmatpush1.xpose.msra.mxu0 0.0
    %73 = vmatprep.subr.mxu0 0.0
    %74 = vmatpush1.xpose.msra.mxu0 0.0
    %75 = vmatprep.subr.mxu0 0.0
    %76 = vmatpush1.xpose.msra.mxu0 0.0
    %77 = vmatprep.subr.mxu0 0.0
    %78 = vmatpush1.xpose.msra.mxu0 0.0
    %79 = vmatprep.subr.mxu0 0.0
    %80 = vmatpush1.xpose.msra.mxu0 0.0
    %81 = vmatprep.subr.mxu0 0.0
    %82 = vmatpush1.xpose.msra.mxu0 0.0
    %83 = vmatprep.subr.mxu0 0.0
    %84 = vmatpush1.xpose.msra.mxu0 0.0
    %85 = vmatprep.subr.mxu0 0.0
    %86 = vmatpush1.xpose.msra.mxu0 0.0
    %87 = vmatprep.subr.mxu0 0.0
    %88 = vmatpush1.xpose.msra.mxu0 0.0
    %89 = vmatprep.subr.mxu0 0.0
    %90 = vmatpush1.xpose.msra.mxu0 0.0
    %91 = vmatprep.mubr.f32.mxu0 0.0
    %92 = vmatmul.mubr.f32.gmra.mrb[0].mxu0 %v26
    %v93 = vpop.f32.mrb[0].mxu0
    %v94 = vadd.f32 0.0, %v93
    %v95 = vpop.f32.mrb[0].mxu0
    %96 = vdwg.mxu0
    %v97 = vmul.f32 %v94, 2.0
    %v98 = vsub.f32 2.0, %v97
    %v99 = vmax.f32 %v98, 1e-12
    %v100 = vrsqrt.pop %v99
    %v101 = vmul.f32 %v99, %v100
    %vm102 = vcmp.eq.f32.partialorder %v99, inf
    %v103 = vsel %vm102, %v99, %v101
    %vm104 = vcmp.eq.f32.partialorder %v99, 0.0
    %v105 = vand.u32 %v99, 2147483648
    %v106 = vsel %vm104, %v105, %v103
    %v107 = vmul.f32 %v106, -40.0
    %v108 = vmul.f32 %v107, 1.442695
    %v109 = vpow.pop %v108
    %vm110 = vcmask 64512
    %v111 = vsel %vm110, %v109, 0.0
    %112 = vadd.xlane.f32.xlu0 %v111
    %v113 = vpop.xlane.xlu0 %112
    %v114 = vlog2.pop %v113
    %v115 = vmul.f32 %v114, 0.6931472
    %v116 = vsub.f32 %v107, %v115
    %v117 = vmul.f32 %v116, 1.442695
    %v118 = vpow.pop %v117
    %v119 = vld [vmem:[#allocation2 + $0x8] sm:$0xff]
    %v120 = vmul.f32 %v119, %v119
    %121 = vadd.xlane.f32.xlu0 %v120
    %v122 = vpop.xlane.xlu0 %121
    %v123 = vrsqrt.pop %v122
    %v124 = vmul.f32 %v119, %v123
    %125 = vmatprep.subr.mxu0 0.0
    %126 = vmatpush1.xpose.msra.mxu0 %v124
    %127 = vmatprep.subr.mxu0 0.0
    %128 = vmatpush1.xpose.msra.mxu0 0.0
    %129 = vmatprep.subr.mxu0 0.0
    %130 = vmatpush1.xpose.msra.mxu0 0.0
    %131 = vmatprep.subr.mxu0 0.0
    %132 = vmatpush1.xpose.msra.mxu0 0.0
    %133 = vmatprep.subr.mxu0 0.0
    %134 = vmatpush1.xpose.msra.mxu0 0.0
    %135 = vmatprep.subr.mxu0 0.0
    %136 = vmatpush1.xpose.msra.mxu0 0.0
    %137 = vmatprep.subr.mxu0 0.0
    %138 = vmatpush1.xpose.msra.mxu0 0.0
    %139 = vmatprep.subr.mxu0 0.0
    %140 = vmatpush1.xpose.msra.mxu0 0.0
    %141 = vmatprep.subr.mxu0 0.0
    %142 = vmatpush1.xpose.msra.mxu0 0.0
    %143 = vmatprep.subr.mxu0 0.0
    %144 = vmatpush1.xpose.msra.mxu0 0.0
    %145 = vmatprep.subr.mxu0 0.0
    %146 = vmatpush1.xpose.msra.mxu0 0.0
    %147 = vmatprep.subr.mxu0 0.0
    %148 = vmatpush1.xpose.msra.mxu0 0.0
    %149 = vmatprep.subr.mxu0 0.0
    %150 = vmatpush1.xpose.msra.mxu0 0.0
    %151 = vmatprep.subr.mxu0 0.0
    %152 = vmatpush1.xpose.msra.mxu0 0.0
    %153 = vmatprep.subr.mxu0 0.0
    %154 = vmatpush1.xpose.msra.mxu0 0.0
    %155 = vmatprep.subr.mxu0 0.0
    %156 = vmatpush1.xpose.msra.mxu0 0.0
    %157 = vmatprep.subr.mxu0 0.0
    %158 = vmatpush1.xpose.msra.mxu0 0.0
    %159 = vmatprep.subr.mxu0 0.0
    %160 = vmatpush1.xpose.msra.mxu0 0.0
    %161 = vmatprep.subr.mxu0 0.0
    %162 = vmatpush1.xpose.msra.mxu0 0.0
    %163 = vmatprep.subr.mxu0 0.0
    %164 = vmatpush1.xpose.msra.mxu0 0.0
    %165 = vmatprep.subr.mxu0 0.0
    %166 = vmatpush1.xpose.msra.mxu0 0.0
    %167 = vmatprep.subr.mxu0 0.0
    %168 = vmatpush1.xpose.msra.mxu0 0.0
    %169 = vmatprep.subr.mxu0 0.0
    %170 = vmatpush1.xpose.msra.mxu0 0.0
    %171 = vmatprep.subr.mxu0 0.0
    %172 = vmatpush1.xpose.msra.mxu0 0.0
    %173 = vmatprep.subr.mxu0 0.0
    %174 = vmatpush1.xpose.msra.mxu0 0.0
    %175 = vmatprep.subr.mxu0 0.0
    %176 = vmatpush1.xpose.msra.mxu0 0.0
    %177 = vmatprep.subr.mxu0 0.0
    %178 = vmatpush1.xpose.msra.mxu0 0.0
    %179 = vmatprep.subr.mxu0 0.0
    %180 = vmatpush1.xpose.msra.mxu0 0.0
    %181 = vmatprep.subr.mxu0 0.0
    %182 = vmatpush1.xpose.msra.mxu0 0.0
    %183 = vmatprep.subr.mxu0 0.0
    %184 = vmatpush1.xpose.msra.mxu0 0.0
    %185 = vmatprep.subr.mxu0 0.0
    %186 = vmatpush1.xpose.msra.mxu0 0.0
    %187 = vmatprep.subr.mxu0 0.0
    %188 = vmatpush1.xpose.msra.mxu0 0.0
    %189 = vmatprep.mubr.f32.mxu0 0.0
    %190 = vmatmul.mubr.f32.gmra.mrb[0].mxu0 %v124
    %v191 = vpop.f32.mrb[0].mxu0
    %v192 = vadd.f32 0.0, %v191
    %v193 = vpop.f32.mrb[0].mxu0
    %194 = vdwg.mxu0
    %v195 = vmul.f32 %v192, 2.0
    %v196 = vsub.f32 2.0, %v195
    %v197 = vmax.f32 %v196, 1e-12
    %v198 = vrsqrt.pop %v197
    %v199 = vmul.f32 %v197, %v198
    %vm200 = vcmp.eq.f32.partialorder %v197, inf
    %v201 = vsel %vm200, %v197, %v199
    %vm202 = vcmp.eq.f32.partialorder %v197, 0.0
    %v203 = vand.u32 %v197, 2147483648
    %v204 = vsel %vm202, %v203, %v201
    %v205 = vmul.f32 %v204, -40.0
    %v206 = vmul.f32 %v205, 1.442695
    %v207 = vpow.pop %v206
    %v208 = vsel %vm110, %v207, 0.0
    %209 = vadd.xlane.f32.xlu0 %v208
    %v210 = vpop.xlane.xlu0 %209
    %v211 = vlog2.pop %v210
    %v212 = vmul.f32 %v211, 0.6931472
    %v213 = vsub.f32 %v205, %v212
    %v214 = vmul.f32 %v213, 1.442695
    %v215 = vpow.pop %v214
    %v216 = vld [vmem:[#allocation2 + $0x10] sm:$0xff]
    %v217 = vmul.f32 %v216, %v216
    %218 = vadd.xlane.f32.xlu0 %v217
    %v219 = vpop.xlane.xlu0 %218
    %v220 = vrsqrt.pop %v219
    %v221 = vmul.f32 %v216, %v220
    %222 = vmatprep.subr.mxu0 0.0
    %223 = vmatpush1.xpose.msra.mxu0 %v221
    %224 = vmatprep.subr.mxu0 0.0
    %225 = vmatpush1.xpose.msra.mxu0 0.0
    %226 = vmatprep.subr.mxu0 0.0
    %227 = vmatpush1.xpose.msra.mxu0 0.0
    %228 = vmatprep.subr.mxu0 0.0
    %229 = vmatpush1.xpose.msra.mxu0 0.0
    %230 = vmatprep.subr.mxu0 0.0
    %231 = vmatpush1.xpose.msra.mxu0 0.0
    %232 = vmatprep.subr.mxu0 0.0
    %233 = vmatpush1.xpose.msra.mxu0 0.0
    %234 = vmatprep.subr.mxu0 0.0
    %235 = vmatpush1.xpose.msra.mxu0 0.0
    %236 = vmatprep.subr.mxu0 0.0
    %237 = vmatpush1.xpose.msra.mxu0 0.0
    %238 = vmatprep.subr.mxu0 0.0
    %239 = vmatpush1.xpose.msra.mxu0 0.0
    %240 = vmatprep.subr.mxu0 0.0
    %241 = vmatpush1.xpose.msra.mxu0 0.0
    %242 = vmatprep.subr.mxu0 0.0
    %243 = vmatpush1.xpose.msra.mxu0 0.0
    %244 = vmatprep.subr.mxu0 0.0
    %245 = vmatpush1.xpose.msra.mxu0 0.0
    %246 = vmatprep.subr.mxu0 0.0
    %247 = vmatpush1.xpose.msra.mxu0 0.0
    %248 = vmatprep.subr.mxu0 0.0
    %249 = vmatpush1.xpose.msra.mxu0 0.0
    %250 = vmatprep.subr.mxu0 0.0
    %251 = vmatpush1.xpose.msra.mxu0 0.0
    %252 = vmatprep.subr.mxu0 0.0
    %253 = vmatpush1.xpose.msra.mxu0 0.0
    %254 = vmatprep.subr.mxu0 0.0
    %255 = vmatpush1.xpose.msra.mxu0 0.0
    %256 = vmatprep.subr.mxu0 0.0
    %257 = vmatpush1.xpose.msra.mxu0 0.0
    %258 = vmatprep.subr.mxu0 0.0
    %259 = vmatpush1.xpose.msra.mxu0 0.0
    %260 = vmatprep.subr.mxu0 0.0
    %261 = vmatpush1.xpose.msra.mxu0 0.0
    %262 = vmatprep.subr.mxu0 0.0
    %263 = vmatpush1.xpose.msra.mxu0 0.0
    %264 = vmatprep.subr.mxu0 0.0
    %265 = vmatpush1.xpose.msra.mxu0 0.0
    %266 = vmatprep.subr.mxu0 0.0
    %267 = vmatpush1.xpose.msra.mxu0 0.0
    %268 = vmatprep.subr.mxu0 0.0
    %269 = vmatpush1.xpose.msra.mxu0 0.0
    %270 = vmatprep.subr.mxu0 0.0
    %271 = vmatpush1.xpose.msra.mxu0 0.0
    %272 = vmatprep.subr.mxu0 0.0
    %273 = vmatpush1.xpose.msra.mxu0 0.0
    %274 = vmatprep.subr.mxu0 0.0
    %275 = vmatpush1.xpose.msra.mxu0 0.0
    %276 = vmatprep.subr.mxu0 0.0
    %277 = vmatpush1.xpose.msra.mxu0 0.0
    %278 = vmatprep.subr.mxu0 0.0
    %279 = vmatpush1.xpose.msra.mxu0 0.0
    %280 = vmatprep.subr.mxu0 0.0
    %281 = vmatpush1.xpose.msra.mxu0 0.0
    %282 = vmatprep.subr.mxu0 0.0
    %283 = vmatpush1.xpose.msra.mxu0 0.0
    %284 = vmatprep.subr.mxu0 0.0
    %285 = vmatpush1.xpose.msra.mxu0 0.0
    %286 = vmatprep.mubr.f32.mxu0 0.0
    %287 = vmatmul.mubr.f32.gmra.mrb[0].mxu0 %v221
    %v288 = vpop.f32.mrb[0].mxu0
    %v289 = vadd.f32 0.0, %v288
    %v290 = vpop.f32.mrb[0].mxu0
    %291 = vdwg.mxu0
    %v292 = vmul.f32 %v289, 2.0
    %v293 = vsub.f32 2.0, %v292
    %v294 = vmax.f32 %v293, 1e-12
    %v295 = vrsqrt.pop %v294
    %v296 = vmul.f32 %v294, %v295
    %vm297 = vcmp.eq.f32.partialorder %v294, inf
    %v298 = vsel %vm297, %v294, %v296
    %vm299 = vcmp.eq.f32.partialorder %v294, 0.0
    %v300 = vand.u32 %v294, 2147483648
    %v301 = vsel %vm299, %v300, %v298
    %v302 = vmul.f32 %v301, -40.0
    %v303 = vmul.f32 %v302, 1.442695
    %v304 = vpow.pop %v303
    %v305 = vsel %vm110, %v304, 0.0
    %306 = vadd.xlane.f32.xlu0 %v305
    %v307 = vpop.xlane.xlu0 %306
    %v308 = vlog2.pop %v307
    %v309 = vmul.f32 %v308, 0.6931472
    %v310 = vsub.f32 %v302, %v309
    %v311 = vmul.f32 %v310, 1.442695
    %v312 = vpow.pop %v311
    %v313 = vld [vmem:[#allocation2 + $0x18] sm:$0xff]
    %v314 = vmul.f32 %v313, %v313
    %315 = vadd.xlane.f32.xlu0 %v314
    %v316 = vpop.xlane.xlu0 %315
    %v317 = vrsqrt.pop %v316
    %v318 = vmul.f32 %v313, %v317
    %319 = vmatprep.subr.mxu0 0.0
    %320 = vmatpush1.xpose.msra.mxu0 %v318
    %321 = vmatprep.subr.mxu0 0.0
    %322 = vmatpush1.xpose.msra.mxu0 0.0
    %323 = vmatprep.subr.mxu0 0.0
    %324 = vmatpush1.xpose.msra.mxu0 0.0
    %325 = vmatprep.subr.mxu0 0.0
    %326 = vmatpush1.xpose.msra.mxu0 0.0
    %327 = vmatprep.subr.mxu0 0.0
    %328 = vmatpush1.xpose.msra.mxu0 0.0
    %329 = vmatprep.subr.mxu0 0.0
    %330 = vmatpush1.xpose.msra.mxu0 0.0
    %331 = vmatprep.subr.mxu0 0.0
    %332 = vmatpush1.xpose.msra.mxu0 0.0
    %333 = vmatprep.subr.mxu0 0.0
    %334 = vmatpush1.xpose.msra.mxu0 0.0
    %335 = vmatprep.subr.mxu0 0.0
    %336 = vmatpush1.xpose.msra.mxu0 0.0
    %337 = vmatprep.subr.mxu0 0.0
    %338 = vmatpush1.xpose.msra.mxu0 0.0
    %339 = vmatprep.subr.mxu0 0.0
    %340 = vmatpush1.xpose.msra.mxu0 0.0
    %341 = vmatprep.subr.mxu0 0.0
    %342 = vmatpush1.xpose.msra.mxu0 0.0
    %343 = vmatprep.subr.mxu0 0.0
    %344 = vmatpush1.xpose.msra.mxu0 0.0
    %345 = vmatprep.subr.mxu0 0.0
    %346 = vmatpush1.xpose.msra.mxu0 0.0
    %347 = vmatprep.subr.mxu0 0.0
    %348 = vmatpush1.xpose.msra.mxu0 0.0
    %349 = vmatprep.subr.mxu0 0.0
    %350 = vmatpush1.xpose.msra.mxu0 0.0
    %351 = vmatprep.subr.mxu0 0.0
    %352 = vmatpush1.xpose.msra.mxu0 0.0
    %353 = vmatprep.subr.mxu0 0.0
    %354 = vmatpush1.xpose.msra.mxu0 0.0
    %355 = vmatprep.subr.mxu0 0.0
    %356 = vmatpush1.xpose.msra.mxu0 0.0
    %357 = vmatprep.subr.mxu0 0.0
    %358 = vmatpush1.xpose.msra.mxu0 0.0
    %359 = vmatprep.subr.mxu0 0.0
    %360 = vmatpush1.xpose.msra.mxu0 0.0
    %361 = vmatprep.subr.mxu0 0.0
    %362 = vmatpush1.xpose.msra.mxu0 0.0
    %363 = vmatprep.subr.mxu0 0.0
    %364 = vmatpush1.xpose.msra.mxu0 0.0
    %365 = vmatprep.subr.mxu0 0.0
    %366 = vmatpush1.xpose.msra.mxu0 0.0
    %367 = vmatprep.subr.mxu0 0.0
    %368 = vmatpush1.xpose.msra.mxu0 0.0
    %369 = vmatprep.subr.mxu0 0.0
    %370 = vmatpush1.xpose.msra.mxu0 0.0
    %371 = vmatprep.subr.mxu0 0.0
    %372 = vmatpush1.xpose.msra.mxu0 0.0
    %373 = vmatprep.subr.mxu0 0.0
    %374 = vmatpush1.xpose.msra.mxu0 0.0
    %375 = vmatprep.subr.mxu0 0.0
    %376 = vmatpush1.xpose.msra.mxu0 0.0
    %377 = vmatprep.subr.mxu0 0.0
    %378 = vmatpush1.xpose.msra.mxu0 0.0
    %379 = vmatprep.subr.mxu0 0.0
    %380 = vmatpush1.xpose.msra.mxu0 0.0
    %381 = vmatprep.subr.mxu0 0.0
    %382 = vmatpush1.xpose.msra.mxu0 0.0
    %383 = vmatprep.mubr.f32.mxu0 0.0
    %384 = vmatmul.mubr.f32.gmra.mrb[0].mxu0 %v318
    %v385 = vpop.f32.mrb[0].mxu0
    %v386 = vadd.f32 0.0, %v385
    %v387 = vpop.f32.mrb[0].mxu0
    %388 = vdwg.mxu0
    %v389 = vmul.f32 %v386, 2.0
    %v390 = vsub.f32 2.0, %v389
    %v391 = vmax.f32 %v390, 1e-12
    %v392 = vrsqrt.pop %v391
    %v393 = vmul.f32 %v391, %v392
    %vm394 = vcmp.eq.f32.partialorder %v391, inf
    %v395 = vsel %vm394, %v391, %v393
    %vm396 = vcmp.eq.f32.partialorder %v391, 0.0
    %v397 = vand.u32 %v391, 2147483648
    %v398 = vsel %vm396, %v397, %v395
    %v399 = vmul.f32 %v398, -40.0
    %v400 = vmul.f32 %v399, 1.442695
    %v401 = vpow.pop %v400
    %v402 = vsel %vm110, %v401, 0.0
    %403 = vadd.xlane.f32.xlu0 %v402
    %v404 = vpop.xlane.xlu0 %403
    %v405 = vlog2.pop %v404
    %v406 = vmul.f32 %v405, 0.6931472
    %v407 = vsub.f32 %v399, %v406
    %v408 = vmul.f32 %v407, 1.442695
    %v409 = vpow.pop %v408
    %v410 = vadd.f32 %v118, %v215
    %v411 = vmul.f32 %v410, 0.5
    %v412 = vlog2.pop %v411
    %v413 = vmul.f32 %v412, 0.6931472
    %v414 = vmul.f32 %v413, 2.0
    %v415 = vsub.f32 %v414, %v116
    %v416 = vsub.f32 %v415, %v213
    %v417 = vmul.f32 %v411, %v416
    %v418 = vsel %vm110, %v417, 0.0
    %419 = vadd.xlane.f32.xlu0 %v418
    %v420 = vpop.xlane.xlu0 %419
    %v421 = vrot.slane %v420, 4
    %v422 = vadd.f32 %v420, %v421
    %v423 = vrot.slane %v422, 2
    %v424 = vadd.f32 %v422, %v423
    %v425 = vrot.slane %v424, 1
    %v426 = vadd.f32 %v424, %v425
    %s427 = vtos %v426
    %s428 = sadd.f32 %s427, 0.0
    %v429 = vadd.f32 %v118, %v312
    %v430 = vmul.f32 %v429, 0.5
    %v431 = vlog2.pop %v430
    %v432 = vmul.f32 %v431, 0.6931472
    %v433 = vmul.f32 %v432, 2.0
    %v434 = vsub.f32 %v433, %v116
    %v435 = vsub.f32 %v434, %v310
    %v436 = vmul.f32 %v430, %v435
    %v437 = vsel %vm110, %v436, 0.0
    %438 = vadd.xlane.f32.xlu0 %v437
    %v439 = vpop.xlane.xlu0 %438
    %v440 = vrot.slane %v439, 4
    %v441 = vadd.f32 %v439, %v440
    %v442 = vrot.slane %v441, 2
    %v443 = vadd.f32 %v441, %v442
    %v444 = vrot.slane %v443, 1
    %v445 = vadd.f32 %v443, %v444
    %s446 = vtos %v445
    %s447 = sadd.f32 %s428, %s446
    %v448 = vadd.f32 %v118, %v409
    %v449 = vmul.f32 %v448, 0.5
    %v450 = vlog2.pop %v449
    %v451 = vmul.f32 %v450, 0.6931472
    %v452 = vmul.f32 %v451, 2.0
    %v453 = vsub.f32 %v452, %v116
    %v454 = vsub.f32 %v453, %v407
    %v455 = vmul.f32 %v449, %v454
    %v456 = vsel %vm110, %v455, 0.0
    %457 = vadd.xlane.f32.xlu0 %v456
    %v458 = vpop.xlane.xlu0 %457
    %v459 = vrot.slane %v458, 4
    %v460 = vadd.f32 %v458, %v459
    %v461 = vrot.slane %v460, 2
    %v462 = vadd.f32 %v460, %v461
    %v463 = vrot.slane %v462, 1
    %v464 = vadd.f32 %v462, %v463
    %s465 = vtos %v464
    %s466 = sadd.f32 %s447, %s465
    %v467 = vadd.f32 %v215, %v312
    %v468 = vmul.f32 %v467, 0.5
    %v469 = vlog2.pop %v468
    %v470 = vmul.f32 %v469, 0.6931472
    %v471 = vmul.f32 %v470, 2.0
    %v472 = vsub.f32 %v471, %v213
    %v473 = vsub.f32 %v472, %v310
    %v474 = vmul.f32 %v468, %v473
    %v475 = vsel %vm110, %v474, 0.0
    %476 = vadd.xlane.f32.xlu0 %v475
    %v477 = vpop.xlane.xlu0 %476
    %v478 = vrot.slane %v477, 4
    %v479 = vadd.f32 %v477, %v478
    %v480 = vrot.slane %v479, 2
    %v481 = vadd.f32 %v479, %v480
    %v482 = vrot.slane %v481, 1
    %v483 = vadd.f32 %v481, %v482
    %s484 = vtos %v483
    %s485 = sadd.f32 %s466, %s484
    %v486 = vadd.f32 %v215, %v409
    %v487 = vmul.f32 %v486, 0.5
    %v488 = vlog2.pop %v487
    %v489 = vmul.f32 %v488, 0.6931472
    %v490 = vmul.f32 %v489, 2.0
    %v491 = vsub.f32 %v490, %v213
    %v492 = vsub.f32 %v491, %v407
    %v493 = vmul.f32 %v487, %v492
    %v494 = vsel %vm110, %v493, 0.0
    %495 = vadd.xlane.f32.xlu0 %v494
    %v496 = vpop.xlane.xlu0 %495
    %v497 = vrot.slane %v496, 4
    %v498 = vadd.f32 %v496, %v497
    %v499 = vrot.slane %v498, 2
    %v500 = vadd.f32 %v498, %v499
    %v501 = vrot.slane %v500, 1
    %v502 = vadd.f32 %v500, %v501
    %s503 = vtos %v502
    %s504 = sadd.f32 %s485, %s503
    %v505 = vadd.f32 %v312, %v409
    %v506 = vmul.f32 %v505, 0.5
    %v507 = vlog2.pop %v506
    %v508 = vmul.f32 %v507, 0.6931472
    %v509 = vmul.f32 %v508, 2.0
    %v510 = vsub.f32 %v509, %v310
    %v511 = vsub.f32 %v510, %v407
    %v512 = vmul.f32 %v506, %v511
    %v513 = vsel %vm110, %v512, 0.0
    %514 = vadd.xlane.f32.xlu0 %v513
    %v515 = vpop.xlane.xlu0 %514
    %v516 = vrot.slane %v515, 4
    %v517 = vadd.f32 %v515, %v516
    %v518 = vrot.slane %v517, 2
    %v519 = vadd.f32 %v517, %v518
    %v520 = vrot.slane %v519, 1
    %v521 = vadd.f32 %v519, %v520
    %s522 = vtos %v521
    %s523 = sadd.f32 %s504, %s522
    %s524 = smul.f32 %s523, 0.010416667
    %s525 = scalar_lea.smem [#allocation5], 0
    %526 = sst [smem:[%s525]] %s524
    // Predicated region
    $region10: #{tpu_custom_call.1} parent=1 // pred_check
      _
    $region11: #{tpu_custom_call.1} parent=1 // pred_check_branch
      %528 = sbr.rel (0) target = $region13
    $region12: #{tpu_custom_call.1} parent=1 // pred_region
      %s530 = ssub.s32 16, 16
      %531 = vsyncadd [#allocation4], %s530
      %534 = dma.smem_to_hbm [#allocation5], 16, %s1, [#allocation4]
    $region13: #{tpu_custom_call.1} parent=1 // pred_fallthru
      _
    // Predicated region
    $region14: #{tpu_custom_call.1} parent=1 // pred_check
      _
    $region15: #{tpu_custom_call.1} parent=1 // pred_check_branch
      %536 = sbr.rel (0) target = $region17
    $region16: #{tpu_custom_call.1} parent=1 // pred_region
      %537 = dma.done [#allocation4], 16
    $region17: #{tpu_custom_call.1} parent=1 // pred_fallthru
      _
    %538 = sfence
    %539 = vsyncpa [#allocation3], 1
    %540 = vsyncpa [#allocation4], 1

</llo_original>
